<compile_context>
chip_gen: v6e
topology: v6e:2x2x1
jax: 0.10.0
libtpu: 0.0.40
codegen_flags: <defaults>
</compile_context>

<pallas_src>
import functools

import jax
import jax.numpy as jnp
import numpy as np
from jax.experimental import pallas as pl
from jax.experimental.pallas import tpu as pltpu

_BN_EPS = 1e-5  # nn.BatchNorm1d default eps

_MN_CANDIDATES = (2048, 1536, 1024, 768, 512, 384, 256, 128)


def _hw_params():
    """(vmem budget bytes, max c-tile edge) per TPU generation."""
    kind = ""
    try:
        kind = jax.devices()[0].device_kind.lower()
    except Exception:  # pragma: no cover - defensive
        pass
    if ("v5" in kind) or ("v6" in kind):
        # 128 MiB physical VMEM: allow large correlation tiles.
        return 96 * 1024 * 1024, 2048
    # v7x (64 MiB physical VMEM) and unknown generations: conservative.
    return 48 * 1024 * 1024, 1024


def _pick_mn_tile(e, tk, budget, max_t):
    """Largest c-tile edge that divides e and fits the VMEM budget."""
    cands = [t for t in _MN_CANDIDATES if t <= max_t and e % t == 0]
    if not cands:
        return e  # small feature dim: single full-extent block
    for t in cands:
        # f32 accumulator + double-buffered f32 z1/z2 operand tiles + headroom.
        if 4 * t * t + 16 * tk * t + (2 << 20) <= budget:
            return t
    return cands[-1]


def _pick_batch_tile(b):
    """Batch (MXU contraction) tile; >= 128 always, pad the batch if needed."""
    for c in (512, 256, 128):
        if b % c == 0:
            return c
    return 128 if b <= 1024 else 256


# ----------------------- fused batch-norm statistics ------------------------

def _bn_stats_kernel(z1_ref, z2_ref, m1_ref, s1_ref, m2_ref, s2_ref, *, batch_size):
    k = pl.program_id(1)

    @pl.when(k == 0)
    def _():
        m1_ref[...] = jnp.zeros_like(m1_ref)
        s1_ref[...] = jnp.zeros_like(s1_ref)
        m2_ref[...] = jnp.zeros_like(m2_ref)
        s2_ref[...] = jnp.zeros_like(s2_ref)

    z1 = z1_ref[...].astype(jnp.float32)
    z2 = z2_ref[...].astype(jnp.float32)
    # Outputs are resident across k (block index depends on i only) -> accumulate
    # sum / sumsq directly into them; converted in place below.
    m1_ref[...] += jnp.sum(z1, axis=0, keepdims=True)
    s1_ref[...] += jnp.sum(z1 * z1, axis=0, keepdims=True)
    m2_ref[...] += jnp.sum(z2, axis=0, keepdims=True)
    s2_ref[...] += jnp.sum(z2 * z2, axis=0, keepdims=True)

    @pl.when(k == pl.num_programs(1) - 1)
    def _():
        inv_b = jnp.float32(1.0 / batch_size)
        mu1 = m1_ref[...] * inv_b
        var1 = jnp.maximum(s1_ref[...] * inv_b - mu1 * mu1, 0.0)
        m1_ref[...] = mu1
        s1_ref[...] = jax.lax.rsqrt(var1 + jnp.float32(_BN_EPS))
        mu2 = m2_ref[...] * inv_b
        var2 = jnp.maximum(s2_ref[...] * inv_b - mu2 * mu2, 0.0)
        m2_ref[...] = mu2
        s2_ref[...] = jax.lax.rsqrt(var2 + jnp.float32(_BN_EPS))


def _bn_stats_fused(z1, z2, *, batch_size, te, tb, vmem_limit):
    bp, e = z1.shape
    kernel = functools.partial(_bn_stats_kernel, batch_size=batch_size)
    stat = jax.ShapeDtypeStruct((1, e), jnp.float32)
    return pl.pallas_call(
        kernel,
        out_shape=(stat, stat, stat, stat),
        grid_spec=pltpu.PrefetchScalarGridSpec(
            num_scalar_prefetch=0,
            grid=(e // te, bp // tb),
            in_specs=[pl.BlockSpec((tb, te), lambda i, k: (k, i)),
                      pl.BlockSpec((tb, te), lambda i, k: (k, i))],
            out_specs=tuple(pl.BlockSpec((1, te), lambda i, k: (0, i))
                            for _ in range(4))),
        compiler_params=pltpu.CompilerParams(
            dimension_semantics=("parallel", "arbitrary"),
            vmem_limit_bytes=vmem_limit),
    )(z1, z2)


# ------------------------------- loss kernel --------------------------------

def _barlow_loss_kernel(z1_ref, m1_ref, s1_ref, z2_ref, m2_ref, s2_ref,
                        loss_ref, acc_ref, *, lambd, batch_size):
    i = pl.program_id(0)
    j = pl.program_id(1)
    k = pl.program_id(2)

    @pl.when(k == 0)
    def _():
        acc_ref[...] = jnp.zeros_like(acc_ref)

    # Raw Gram tile of the un-normalized inputs, bf16 on the MXU, f32 accumulate;
    # batch axis contracted directly (no transpose). The BN normalization is the
    # analytic epilogue below: c = s1 s2^T * (Z1^T Z2 / B - m1 m2^T).
    z1b = z1_ref[...].astype(jnp.bfloat16)
    z2b = z2_ref[...].astype(jnp.bfloat16)
    acc_ref[...] += jax.lax.dot_general(
        z1b, z2b,
        dimension_numbers=(((0,), (0,)), ((), ())),
        preferred_element_type=jnp.float32)

    @pl.when(k == pl.num_programs(2) - 1)
    def _():
        inv_b = jnp.float32(1.0 / batch_size)
        g = acc_ref[...] * inv_b                                   # (tm, tn)
        # m1/s1 arrive as (tm, 1) columns, m2/s2 as (1, tn) rows -> pure
        # lane/sublane broadcasts, no in-kernel transpose.
        c = (s1_ref[...] * s2_ref[...]) * (g - m1_ref[...] * m2_ref[...])

        @pl.when(i == j)
        def _():
            tm, tn = acc_ref.shape
            rows = jax.lax.broadcasted_iota(jnp.int32, (tm, tn), 0)
            cols = jax.lax.broadcasted_iota(jnp.int32, (tm, tn), 1)
            on_diag = (c - 1.0) * (c - 1.0)
            off_diag = jnp.float32(lambd) * c * c
            loss_ref[0, 0] = jnp.sum(jnp.where(rows == cols, on_diag, off_diag))

        @pl.when(i != j)
        def _():
            loss_ref[0, 0] = jnp.float32(lambd) * jnp.sum(c * c)


# --------------------------------- wrapper -----------------------------------

@functools.partial(jax.jit, static_argnames=("batch_size", "lambd", "tile_override"))
def barlow_twins_loss(z1, z2, *, batch_size, lambd, tile_override=None):
    """Pallas implementation of BarlowTwinsLoss.forward(z1, z2)."""
    b, e = z1.shape
    assert z2.shape == (b, e)
    assert batch_size == b, "batch_size must equal z.shape[0] (BN stats + loss scaling)"

    vmem_budget, max_t = _hw_params()

    if tile_override is not None:
        tm, tn, tk = tile_override
    else:
        tk = _pick_batch_tile(b)
        tm = _pick_mn_tile(e, tk, vmem_budget, max_t)
        tn = tm
    assert tm == tn, "square c-tiles required for the local-diagonal epilogue"
    assert e % tm == 0

    # Zero-pad the batch to a multiple of tk (>=128): padded rows add nothing to
    # sum / sumsq / Gram and we always divide by the true batch size.
    bp = ((b + tk - 1) // tk) * tk
    if bp != b:
        pad = bp - b
        z1 = jnp.pad(z1, ((0, pad), (0, 0)))
        z2 = jnp.pad(z2, ((0, pad), (0, 0)))

    # Single fused stats pass over both views.
    te = tm
    mean1, inv1, mean2, inv2 = _bn_stats_fused(
        z1, z2, batch_size=b, te=te, tb=tk, vmem_limit=vmem_budget)
    # Tiny (1, E) -> (E, 1) relayout done by plain XLA outside the kernel so the
    # loss kernel only ever does natively supported row/column broadcasts.
    mean1_col = mean1.reshape(e, 1)
    inv1_col = inv1.reshape(e, 1)

    n_i, n_j, n_k = e // tm, e // tn, bp // tk
    kernel = functools.partial(
        _barlow_loss_kernel, lambd=float(lambd), batch_size=int(batch_size))

    partials = pl.pallas_call(
        kernel,
        out_shape=jax.ShapeDtypeStruct((n_i, n_j), jnp.float32),
        grid_spec=pltpu.PrefetchScalarGridSpec(
            num_scalar_prefetch=0,
            grid=(n_i, n_j, n_k),
            in_specs=[
                pl.BlockSpec((tk, tm), lambda i, j, k: (k, i)),   # z1 tile
                pl.BlockSpec((tm, 1), lambda i, j, k: (i, 0)),    # mean1 column
                pl.BlockSpec((tm, 1), lambda i, j, k: (i, 0)),    # invstd1 column
                pl.BlockSpec((tk, tn), lambda i, j, k: (k, j)),   # z2 tile
                pl.BlockSpec((1, tn), lambda i, j, k: (0, j)),    # mean2 row
                pl.BlockSpec((1, tn), lambda i, j, k: (0, j)),    # invstd2 row
            ],
            out_specs=pl.BlockSpec((1, 1), lambda i, j, k: (i, j),
                                   memory_space=pltpu.SMEM),
            scratch_shapes=[pltpu.VMEM((tm, tn), jnp.float32)]),
        compiler_params=pltpu.CompilerParams(
            # Per-(i,j) SMEM partials -> both output-tile axes are safely
            # megacore-parallel; only the batch reduction is sequential.
            dimension_semantics=("parallel", "parallel", "arbitrary"),
            vmem_limit_bytes=vmem_budget),
    )(z1, mean1_col, inv1_col, z2, mean2, inv2)

    return jnp.sum(partials)


# -------------------------------- reference ----------------------------------

def _reference_loss(z1, z2, batch_size, lambd):
    def bn(z):
        mu = z.mean(axis=0, keepdims=True)
        var = ((z - mu) ** 2).mean(axis=0, keepdims=True)
        return (z - mu) / np.sqrt(var + _BN_EPS)

    c = bn(z1).T @ bn(z2) / batch_size
    on_diag = ((np.diagonal(c) - 1.0) ** 2).sum()
    off = c - np.diag(np.diagonal(c))
    return on_diag + lambd * (off ** 2).sum()


if __name__ == "__main__":
    lambd = 0.005
    key = jax.random.PRNGKey(0)
    k1, k2, k3, k4, k5, k6 = jax.random.split(key, 6)

    # Case 1: tiny roost-like toy shapes (exercises batch zero-padding and
    # full-extent feature blocks).
    b1, e1 = 8, 32
    z1 = jax.random.normal(k1, (b1, e1), dtype=jnp.float32)
    z2 = jax.random.normal(k2, (b1, e1), dtype=jnp.float32)
    loss1 = jax.block_until_ready(
        barlow_twins_loss(z1, z2, batch_size=b1, lambd=lambd))

    # Case 2: auto-tiled path, multi-step batch reduction on a single big c-tile.
    b2, e2 = 1024, 384
    z3 = jax.random.normal(k3, (b2, e2), dtype=jnp.float32)
    z4 = jax.random.normal(k4, (b2, e2), dtype=jnp.float32)
    loss2 = jax.block_until_ready(
        barlow_twins_loss(z3, z4, batch_size=b2, lambd=lambd))

    # Case 3: forced small tiles -> 3x3 output tiles; exercises the diagonal and
    # off-diagonal epilogue branches, per-(i,j) SMEM partials and the
    # megacore-parallel i/j grid axes.
    b3, e3 = 512, 384
    z5 = jax.random.normal(k5, (b3, e3), dtype=jnp.float32)
    z6 = jax.random.normal(k6, (b3, e3), dtype=jnp.float32)
    loss3 = jax.block_until_ready(
        barlow_twins_loss(z5, z6, batch_size=b3, lambd=lambd,
                          tile_override=(128, 128, 256)))

    ref1 = _reference_loss(np.asarray(z1, np.float64), np.asarray(z2, np.float64),
                           b1, lambd)
    ref2 = _reference_loss(np.asarray(z3, np.float64), np.asarray(z4, np.float64),
                           b2, lambd)
    ref3 = _reference_loss(np.asarray(z5, np.float64), np.asarray(z6, np.float64),
                           b3, lambd)

    # The Gram is fed to the MXU in bf16 (per the perf review) -> tolerances sized
    # for bf16 input rounding with f32 accumulation.
    np.testing.assert_allclose(float(loss1), float(ref1), rtol=1e-2, atol=1e-2)
    np.testing.assert_allclose(float(loss2), float(ref2), rtol=1e-2, atol=1e-2)
    np.testing.assert_allclose(float(loss3), float(ref3), rtol=1e-2, atol=1e-2)

    print("KERNEL_OK")
</pallas_src>

<mosaic_0001>
module attributes {stable_mosaic.version = 11 : i64} {
  func.func @_bn_stats_kernel(%arg0: i32, %arg1: i32, %arg2: memref<128x32xf32, #tpu.memory_space<vmem>>, %arg3: memref<128x32xf32, #tpu.memory_space<vmem>>, %arg4: memref<1x32xf32, #tpu.memory_space<vmem>>, %arg5: memref<1x32xf32, #tpu.memory_space<vmem>>, %arg6: memref<1x32xf32, #tpu.memory_space<vmem>>, %arg7: memref<1x32xf32, #tpu.memory_space<vmem>>) attributes {dimension_semantics = [#tpu.dimension_semantics<parallel>, #tpu.dimension_semantics<arbitrary>], iteration_bounds = array<i64: 1, 1>, scalar_prefetch = 0 : i64, scratch_operands = 0 : i64, tpu.core_type = #tpu.core_type<tc>, window_params = [{transform_indices = @transform_0, window_bounds = array<i64: 128, 32>}, {transform_indices = @transform_1, window_bounds = array<i64: 128, 32>}, {transform_indices = @transform_2, window_bounds = array<i64: 1, 32>}, {transform_indices = @transform_3, window_bounds = array<i64: 1, 32>}, {transform_indices = @transform_4, window_bounds = array<i64: 1, 32>}, {transform_indices = @transform_5, window_bounds = array<i64: 1, 32>}]} {
    %c0_i32 = arith.constant 0 : i32
    %0 = arith.cmpi eq, %arg1, %c0_i32 : i32
    %1 = arith.extui %0 : i1 to i32
    %c0_i32_0 = arith.constant 0 : i32
    %2 = arith.cmpi ne, %1, %c0_i32_0 : i32
    scf.if %2 {
      %cst_25 = arith.constant 0.000000e+00 : f32
      %30 = vector.broadcast %cst_25 : f32 to vector<1x32xf32>
      %c0_26 = arith.constant 0 : index
      %c0_27 = arith.constant 0 : index
      %31 = vector.load %arg4[%c0_26, %c0_27] : memref<1x32xf32, #tpu.memory_space<vmem>>, vector<1x32xf32>
      tpu.vector_store %arg4[%c0_26, %c0_27], %30 {strides = array<i32>} : memref<1x32xf32, #tpu.memory_space<vmem>>, vector<1x32xf32>,
      %cst_28 = arith.constant 0.000000e+00 : f32
      %32 = vector.broadcast %cst_28 : f32 to vector<1x32xf32>
      %c0_29 = arith.constant 0 : index
      %c0_30 = arith.constant 0 : index
      %33 = vector.load %arg5[%c0_29, %c0_30] : memref<1x32xf32, #tpu.memory_space<vmem>>, vector<1x32xf32>
      tpu.vector_store %arg5[%c0_29, %c0_30], %32 {strides = array<i32>} : memref<1x32xf32, #tpu.memory_space<vmem>>, vector<1x32xf32>,
      %cst_31 = arith.constant 0.000000e+00 : f32
      %34 = vector.broadcast %cst_31 : f32 to vector<1x32xf32>
      %c0_32 = arith.constant 0 : index
      %c0_33 = arith.constant 0 : index
      %35 = vector.load %arg6[%c0_32, %c0_33] : memref<1x32xf32, #tpu.memory_space<vmem>>, vector<1x32xf32>
      tpu.vector_store %arg6[%c0_32, %c0_33], %34 {strides = array<i32>} : memref<1x32xf32, #tpu.memory_space<vmem>>, vector<1x32xf32>,
      %cst_34 = arith.constant 0.000000e+00 : f32
      %36 = vector.broadcast %cst_34 : f32 to vector<1x32xf32>
      %c0_35 = arith.constant 0 : index
      %c0_36 = arith.constant 0 : index
      %37 = vector.load %arg7[%c0_35, %c0_36] : memref<1x32xf32, #tpu.memory_space<vmem>>, vector<1x32xf32>
      tpu.vector_store %arg7[%c0_35, %c0_36], %36 {strides = array<i32>} : memref<1x32xf32, #tpu.memory_space<vmem>>, vector<1x32xf32>,
    } else {
    }
    %c0 = arith.constant 0 : index
    %c0_1 = arith.constant 0 : index
    %3 = vector.load %arg2[%c0, %c0_1] : memref<128x32xf32, #tpu.memory_space<vmem>>, vector<128x32xf32>
    %c0_2 = arith.constant 0 : index
    %c0_3 = arith.constant 0 : index
    %4 = vector.load %arg3[%c0_2, %c0_3] : memref<128x32xf32, #tpu.memory_space<vmem>>, vector<128x32xf32>
    %c0_4 = arith.constant 0 : index
    %c0_5 = arith.constant 0 : index
    %5 = vector.load %arg4[%c0_4, %c0_5] : memref<1x32xf32, #tpu.memory_space<vmem>>, vector<1x32xf32>
    %cst = arith.constant dense<0.000000e+00> : vector<32xf32>
    %6 = vector.multi_reduction <add>, %3, %cst [0] : vector<128x32xf32> to vector<32xf32>
    %7 = vector.shape_cast %6 : vector<32xf32> to vector<1x32xf32>
    %8 = arith.addf %5, %7 : vector<1x32xf32>
    %c0_6 = arith.constant 0 : index
    %c0_7 = arith.constant 0 : index
    %9 = vector.load %arg4[%c0_6, %c0_7] : memref<1x32xf32, #tpu.memory_space<vmem>>, vector<1x32xf32>
    tpu.vector_store %arg4[%c0_6, %c0_7], %8 {strides = array<i32>} : memref<1x32xf32, #tpu.memory_space<vmem>>, vector<1x32xf32>,
    %c0_8 = arith.constant 0 : index
    %c0_9 = arith.constant 0 : index
    %10 = vector.load %arg5[%c0_8, %c0_9] : memref<1x32xf32, #tpu.memory_space<vmem>>, vector<1x32xf32>
    %11 = arith.mulf %3, %3 : vector<128x32xf32>
    %cst_10 = arith.constant dense<0.000000e+00> : vector<32xf32>
    %12 = vector.multi_reduction <add>, %11, %cst_10 [0] : vector<128x32xf32> to vector<32xf32>
    %13 = vector.shape_cast %12 : vector<32xf32> to vector<1x32xf32>
    %14 = arith.addf %10, %13 : vector<1x32xf32>
    %c0_11 = arith.constant 0 : index
    %c0_12 = arith.constant 0 : index
    %15 = vector.load %arg5[%c0_11, %c0_12] : memref<1x32xf32, #tpu.memory_space<vmem>>, vector<1x32xf32>
    tpu.vector_store %arg5[%c0_11, %c0_12], %14 {strides = array<i32>} : memref<1x32xf32, #tpu.memory_space<vmem>>, vector<1x32xf32>,
    %c0_13 = arith.constant 0 : index
    %c0_14 = arith.constant 0 : index
    %16 = vector.load %arg6[%c0_13, %c0_14] : memref<1x32xf32, #tpu.memory_space<vmem>>, vector<1x32xf32>
    %cst_15 = arith.constant dense<0.000000e+00> : vector<32xf32>
    %17 = vector.multi_reduction <add>, %4, %cst_15 [0] : vector<128x32xf32> to vector<32xf32>
    %18 = vector.shape_cast %17 : vector<32xf32> to vector<1x32xf32>
    %19 = arith.addf %16, %18 : vector<1x32xf32>
    %c0_16 = arith.constant 0 : index
    %c0_17 = arith.constant 0 : index
    %20 = vector.load %arg6[%c0_16, %c0_17] : memref<1x32xf32, #tpu.memory_space<vmem>>, vector<1x32xf32>
    tpu.vector_store %arg6[%c0_16, %c0_17], %19 {strides = array<i32>} : memref<1x32xf32, #tpu.memory_space<vmem>>, vector<1x32xf32>,
    %c0_18 = arith.constant 0 : index
    %c0_19 = arith.constant 0 : index
    %21 = vector.load %arg7[%c0_18, %c0_19] : memref<1x32xf32, #tpu.memory_space<vmem>>, vector<1x32xf32>
    %22 = arith.mulf %4, %4 : vector<128x32xf32>
    %cst_20 = arith.constant dense<0.000000e+00> : vector<32xf32>
    %23 = vector.multi_reduction <add>, %22, %cst_20 [0] : vector<128x32xf32> to vector<32xf32>
    %24 = vector.shape_cast %23 : vector<32xf32> to vector<1x32xf32>
    %25 = arith.addf %21, %24 : vector<1x32xf32>
    %c0_21 = arith.constant 0 : index
    %c0_22 = arith.constant 0 : index
    %26 = vector.load %arg7[%c0_21, %c0_22] : memref<1x32xf32, #tpu.memory_space<vmem>>, vector<1x32xf32>
    tpu.vector_store %arg7[%c0_21, %c0_22], %25 {strides = array<i32>} : memref<1x32xf32, #tpu.memory_space<vmem>>, vector<1x32xf32>,
    %c0_i32_23 = arith.constant 0 : i32
    %27 = arith.cmpi eq, %arg1, %c0_i32_23 : i32
    %28 = arith.extui %27 : i1 to i32
    %c0_i32_24 = arith.constant 0 : i32
    %29 = arith.cmpi ne, %28, %c0_i32_24 : i32
    scf.if %29 {
      %c0_25 = arith.constant 0 : index
      %c0_26 = arith.constant 0 : index
      %30 = vector.load %arg4[%c0_25, %c0_26] : memref<1x32xf32, #tpu.memory_space<vmem>>, vector<1x32xf32>
      %cst_27 = arith.constant 1.250000e-01 : f32
      %31 = vector.broadcast %cst_27 : f32 to vector<1x32xf32>
      %32 = arith.mulf %30, %31 : vector<1x32xf32>
      %c0_28 = arith.constant 0 : index
      %c0_29 = arith.constant 0 : index
      %33 = vector.load %arg5[%c0_28, %c0_29] : memref<1x32xf32, #tpu.memory_space<vmem>>, vector<1x32xf32>
      %cst_30 = arith.constant 1.250000e-01 : f32
      %34 = vector.broadcast %cst_30 : f32 to vector<1x32xf32>
      %35 = arith.mulf %33, %34 : vector<1x32xf32>
      %36 = arith.mulf %32, %32 : vector<1x32xf32>
      %37 = arith.subf %35, %36 : vector<1x32xf32>
      %cst_31 = arith.constant 0.000000e+00 : f32
      %38 = vector.broadcast %cst_31 : f32 to vector<1x32xf32>
      %39 = arith.maximumf %37, %38 : vector<1x32xf32>
      %c0_32 = arith.constant 0 : index
      %c0_33 = arith.constant 0 : index
      %40 = vector.load %arg4[%c0_32, %c0_33] : memref<1x32xf32, #tpu.memory_space<vmem>>, vector<1x32xf32>
      tpu.vector_store %arg4[%c0_32, %c0_33], %32 {strides = array<i32>} : memref<1x32xf32, #tpu.memory_space<vmem>>, vector<1x32xf32>,
      %cst_34 = arith.constant 9.99999974E-6 : f32
      %41 = vector.broadcast %cst_34 : f32 to vector<1x32xf32>
      %42 = arith.addf %39, %41 : vector<1x32xf32>
      %43 = math.rsqrt %42 : vector<1x32xf32>
      %c0_35 = arith.constant 0 : index
      %c0_36 = arith.constant 0 : index
      %44 = vector.load %arg5[%c0_35, %c0_36] : memref<1x32xf32, #tpu.memory_space<vmem>>, vector<1x32xf32>
      tpu.vector_store %arg5[%c0_35, %c0_36], %43 {strides = array<i32>} : memref<1x32xf32, #tpu.memory_space<vmem>>, vector<1x32xf32>,
      %c0_37 = arith.constant 0 : index
      %c0_38 = arith.constant 0 : index
      %45 = vector.load %arg6[%c0_37, %c0_38] : memref<1x32xf32, #tpu.memory_space<vmem>>, vector<1x32xf32>
      %cst_39 = arith.constant 1.250000e-01 : f32
      %46 = vector.broadcast %cst_39 : f32 to vector<1x32xf32>
      %47 = arith.mulf %45, %46 : vector<1x32xf32>
      %c0_40 = arith.constant 0 : index
      %c0_41 = arith.constant 0 : index
      %48 = vector.load %arg7[%c0_40, %c0_41] : memref<1x32xf32, #tpu.memory_space<vmem>>, vector<1x32xf32>
      %cst_42 = arith.constant 1.250000e-01 : f32
      %49 = vector.broadcast %cst_42 : f32 to vector<1x32xf32>
      %50 = arith.mulf %48, %49 : vector<1x32xf32>
      %51 = arith.mulf %47, %47 : vector<1x32xf32>
      %52 = arith.subf %50, %51 : vector<1x32xf32>
      %cst_43 = arith.constant 0.000000e+00 : f32
      %53 = vector.broadcast %cst_43 : f32 to vector<1x32xf32>
      %54 = arith.maximumf %52, %53 : vector<1x32xf32>
      %c0_44 = arith.constant 0 : index
      %c0_45 = arith.constant 0 : index
      %55 = vector.load %arg6[%c0_44, %c0_45] : memref<1x32xf32, #tpu.memory_space<vmem>>, vector<1x32xf32>
      tpu.vector_store %arg6[%c0_44, %c0_45], %47 {strides = array<i32>} : memref<1x32xf32, #tpu.memory_space<vmem>>, vector<1x32xf32>,
      %cst_46 = arith.constant 9.99999974E-6 : f32
      %56 = vector.broadcast %cst_46 : f32 to vector<1x32xf32>
      %57 = arith.addf %54, %56 : vector<1x32xf32>
      %58 = math.rsqrt %57 : vector<1x32xf32>
      %c0_47 = arith.constant 0 : index
      %c0_48 = arith.constant 0 : index
      %59 = vector.load %arg7[%c0_47, %c0_48] : memref<1x32xf32, #tpu.memory_space<vmem>>, vector<1x32xf32>
      tpu.vector_store %arg7[%c0_47, %c0_48], %58 {strides = array<i32>} : memref<1x32xf32, #tpu.memory_space<vmem>>, vector<1x32xf32>,
    } else {
    }
    return
  }
  func.func @transform_0(%arg0: i32, %arg1: i32) -> (i32, i32) {
    %c0_i32 = arith.constant 0 : i32
    return %arg1, %arg0 : i32, i32
  }
  func.func @transform_1(%arg0: i32, %arg1: i32) -> (i32, i32) {
    %c0_i32 = arith.constant 0 : i32
    return %arg1, %arg0 : i32, i32
  }
  func.func @transform_2(%arg0: i32, %arg1: i32) -> (i32, i32) {
    %c0_i32 = arith.constant 0 : i32
    %c0_i32_0 = arith.constant 0 : i32
    return %c0_i32, %arg0 : i32, i32
  }
  func.func @transform_3(%arg0: i32, %arg1: i32) -> (i32, i32) {
    %c0_i32 = arith.constant 0 : i32
    %c0_i32_0 = arith.constant 0 : i32
    return %c0_i32, %arg0 : i32, i32
  }
  func.func @transform_4(%arg0: i32, %arg1: i32) -> (i32, i32) {
    %c0_i32 = arith.constant 0 : i32
    %c0_i32_0 = arith.constant 0 : i32
    return %c0_i32, %arg0 : i32, i32
  }
  func.func @transform_5(%arg0: i32, %arg1: i32) -> (i32, i32) {
    %c0_i32 = arith.constant 0 : i32
    %c0_i32_0 = arith.constant 0 : i32
    return %c0_i32, %arg0 : i32, i32
  }
}

module attributes {stable_mosaic.version = 11 : i64} {
  func.func @_barlow_loss_kernel(%arg0: i32, %arg1: i32, %arg2: i32, %arg3: memref<128x32xf32, #tpu.memory_space<vmem>>, %arg4: memref<32x1xf32, #tpu.memory_space<vmem>>, %arg5: memref<32x1xf32, #tpu.memory_space<vmem>>, %arg6: memref<128x32xf32, #tpu.memory_space<vmem>>, %arg7: memref<1x32xf32, #tpu.memory_space<vmem>>, %arg8: memref<1x32xf32, #tpu.memory_space<vmem>>, %arg9: memref<1x1xf32, #tpu.memory_space<smem>>, %arg10: memref<32x32xf32, #tpu.memory_space<vmem>>) attributes {dimension_semantics = [#tpu.dimension_semantics<parallel>, #tpu.dimension_semantics<parallel>, #tpu.dimension_semantics<arbitrary>], iteration_bounds = array<i64: 1, 1, 1>, scalar_prefetch = 0 : i64, scratch_operands = 1 : i64, tpu.core_type = #tpu.core_type<tc>, window_params = [{transform_indices = @transform_0, window_bounds = array<i64: 128, 32>}, {transform_indices = @transform_1, window_bounds = array<i64: 32, 1>}, {transform_indices = @transform_2, window_bounds = array<i64: 32, 1>}, {transform_indices = @transform_3, window_bounds = array<i64: 128, 32>}, {transform_indices = @transform_4, window_bounds = array<i64: 1, 32>}, {transform_indices = @transform_5, window_bounds = array<i64: 1, 32>}, {transform_indices = @transform_6, window_bounds = array<i64: 1, 1>}]} {
    %c0_i32 = arith.constant 0 : i32
    %0 = arith.cmpi eq, %arg2, %c0_i32 : i32
    %1 = arith.extui %0 : i1 to i32
    %c0_i32_0 = arith.constant 0 : i32
    %2 = arith.cmpi ne, %1, %c0_i32_0 : i32
    scf.if %2 {
      %cst_10 = arith.constant 0.000000e+00 : f32
      %14 = vector.broadcast %cst_10 : f32 to vector<32x32xf32>
      %c0_11 = arith.constant 0 : index
      %c0_12 = arith.constant 0 : index
      %15 = vector.load %arg10[%c0_11, %c0_12] : memref<32x32xf32, #tpu.memory_space<vmem>>, vector<32x32xf32>
      tpu.vector_store %arg10[%c0_11, %c0_12], %14 {strides = array<i32>} : memref<32x32xf32, #tpu.memory_space<vmem>>, vector<32x32xf32>,
    } else {
    }
    %c0 = arith.constant 0 : index
    %c0_1 = arith.constant 0 : index
    %3 = vector.load %arg3[%c0, %c0_1] : memref<128x32xf32, #tpu.memory_space<vmem>>, vector<128x32xf32>
    %4 = arith.truncf %3 : vector<128x32xf32> to vector<128x32xbf16>
    %c0_2 = arith.constant 0 : index
    %c0_3 = arith.constant 0 : index
    %5 = vector.load %arg6[%c0_2, %c0_3] : memref<128x32xf32, #tpu.memory_space<vmem>>, vector<128x32xf32>
    %6 = arith.truncf %5 : vector<128x32xf32> to vector<128x32xbf16>
    %c0_4 = arith.constant 0 : index
    %c0_5 = arith.constant 0 : index
    %7 = vector.load %arg10[%c0_4, %c0_5] : memref<32x32xf32, #tpu.memory_space<vmem>>, vector<32x32xf32>
    %cst = arith.constant dense<0.000000e+00> : vector<32x32xf32>
    %8 = tpu.matmul %4, %6, %cst {dimension_numbers = #tpu.dot_dimension_numbers<[0], [0], [1], [1], [0, 1, 1, 1], [], []>} : vector<128x32xbf16>, vector<128x32xbf16>, vector<32x32xf32> -> vector<32x32xf32>
    %9 = arith.addf %7, %8 : vector<32x32xf32>
    %c0_6 = arith.constant 0 : index
    %c0_7 = arith.constant 0 : index
    %10 = vector.load %arg10[%c0_6, %c0_7] : memref<32x32xf32, #tpu.memory_space<vmem>>, vector<32x32xf32>
    tpu.vector_store %arg10[%c0_6, %c0_7], %9 {strides = array<i32>} : memref<32x32xf32, #tpu.memory_space<vmem>>, vector<32x32xf32>,
    %c0_i32_8 = arith.constant 0 : i32
    %11 = arith.cmpi eq, %arg2, %c0_i32_8 : i32
    %12 = arith.extui %11 : i1 to i32
    %c0_i32_9 = arith.constant 0 : i32
    %13 = arith.cmpi ne, %12, %c0_i32_9 : i32
    scf.if %13 {
      %c0_10 = arith.constant 0 : index
      %c0_11 = arith.constant 0 : index
      %14 = vector.load %arg10[%c0_10, %c0_11] : memref<32x32xf32, #tpu.memory_space<vmem>>, vector<32x32xf32>
      %cst_12 = arith.constant 1.250000e-01 : f32
      %15 = vector.broadcast %cst_12 : f32 to vector<32x32xf32>
      %16 = arith.mulf %14, %15 : vector<32x32xf32>
      %c0_13 = arith.constant 0 : index
      %c0_14 = arith.constant 0 : index
      %17 = vector.load %arg5[%c0_13, %c0_14] : memref<32x1xf32, #tpu.memory_space<vmem>>, vector<32x1xf32>
      %c0_15 = arith.constant 0 : index
      %c0_16 = arith.constant 0 : index
      %18 = vector.load %arg8[%c0_15, %c0_16] : memref<1x32xf32, #tpu.memory_space<vmem>>, vector<1x32xf32>
      %19 = vector.broadcast %17 : vector<32x1xf32> to vector<32x32xf32>
      %20 = vector.broadcast %18 : vector<1x32xf32> to vector<32x32xf32>
      %21 = arith.mulf %19, %20 : vector<32x32xf32>
      %c0_17 = arith.constant 0 : index
      %c0_18 = arith.constant 0 : index
      %22 = vector.load %arg4[%c0_17, %c0_18] : memref<32x1xf32, #tpu.memory_space<vmem>>, vector<32x1xf32>
      %c0_19 = arith.constant 0 : index
      %c0_20 = arith.constant 0 : index
      %23 = vector.load %arg7[%c0_19, %c0_20] : memref<1x32xf32, #tpu.memory_space<vmem>>, vector<1x32xf32>
      %24 = vector.broadcast %22 : vector<32x1xf32> to vector<32x32xf32>
      %25 = vector.broadcast %23 : vector<1x32xf32> to vector<32x32xf32>
      %26 = arith.mulf %24, %25 : vector<32x32xf32>
      %27 = arith.subf %16, %26 : vector<32x32xf32>
      %28 = arith.mulf %21, %27 : vector<32x32xf32>
      %29 = arith.cmpi eq, %arg0, %arg1 : i32
      %30 = arith.extui %29 : i1 to i32
      %c0_i32_21 = arith.constant 0 : i32
      %31 = arith.cmpi ne, %30, %c0_i32_21 : i32
      scf.if %31 {
        %35 = tpu.iota {dimensions = array<i32: 0>} : vector<32x32xi32>
        %36 = tpu.iota {dimensions = array<i32: 1>} : vector<32x32xi32>
        %cst_23 = arith.constant 1.000000e+00 : f32
        %37 = vector.broadcast %cst_23 : f32 to vector<32x32xf32>
        %38 = arith.subf %28, %37 : vector<32x32xf32>
        %cst_24 = arith.constant 1.000000e+00 : f32
        %39 = vector.broadcast %cst_24 : f32 to vector<32x32xf32>
        %40 = arith.subf %28, %39 : vector<32x32xf32>
        %41 = arith.mulf %38, %40 : vector<32x32xf32>
        %cst_25 = arith.constant 5.000000e-03 : f32
        %42 = vector.broadcast %cst_25 : f32 to vector<32x32xf32>
        %43 = arith.mulf %42, %28 : vector<32x32xf32>
        %44 = arith.mulf %43, %28 : vector<32x32xf32>
        %45 = arith.cmpi eq, %35, %36 : vector<32x32xi32>
        %46 = arith.select %45, %41, %44 : vector<32x32xi1>, vector<32x32xf32>
        %47 = vector.shape_cast %46 : vector<32x32xf32> to vector<1x32x32xf32>
        %cst_26 = arith.constant dense<0.000000e+00> : vector<1xf32>
        %48 = vector.multi_reduction <add>, %47, %cst_26 [1, 2] : vector<1x32x32xf32> to vector<1xf32>
        %49 = vector.shape_cast %48 : vector<1xf32> to vector<1x1x1xf32>
        %50 = vector.extract %49[0, 0, 0] : f32 from vector<1x1x1xf32>
        %c0_27 = arith.constant 0 : index
        %c0_28 = arith.constant 0 : index
        %51 = memref.load %arg9[%c0_27, %c0_28] : memref<1x1xf32, #tpu.memory_space<smem>>
        memref.store %50, %arg9[%c0_27, %c0_28] : memref<1x1xf32, #tpu.memory_space<smem>>
      } else {
      }
      %32 = arith.cmpi ne, %arg0, %arg1 : i32
      %33 = arith.extui %32 : i1 to i32
      %c0_i32_22 = arith.constant 0 : i32
      %34 = arith.cmpi ne, %33, %c0_i32_22 : i32
      scf.if %34 {
        %35 = arith.mulf %28, %28 : vector<32x32xf32>
        %36 = vector.shape_cast %35 : vector<32x32xf32> to vector<1x32x32xf32>
        %cst_23 = arith.constant dense<0.000000e+00> : vector<1xf32>
        %37 = vector.multi_reduction <add>, %36, %cst_23 [1, 2] : vector<1x32x32xf32> to vector<1xf32>
        %38 = vector.shape_cast %37 : vector<1xf32> to vector<1x1x1xf32>
        %39 = vector.extract %38[0, 0, 0] : f32 from vector<1x1x1xf32>
        %cst_24 = arith.constant 5.000000e-03 : f32
        %40 = arith.mulf %cst_24, %39 : f32
        %c0_25 = arith.constant 0 : index
        %c0_26 = arith.constant 0 : index
        %41 = memref.load %arg9[%c0_25, %c0_26] : memref<1x1xf32, #tpu.memory_space<smem>>
        memref.store %40, %arg9[%c0_25, %c0_26] : memref<1x1xf32, #tpu.memory_space<smem>>
      } else {
      }
    } else {
    }
    return
  }
  func.func @transform_0(%arg0: i32, %arg1: i32, %arg2: i32) -> (i32, i32) {
    %c0_i32 = arith.constant 0 : i32
    return %arg2, %arg0 : i32, i32
  }
  func.func @transform_1(%arg0: i32, %arg1: i32, %arg2: i32) -> (i32, i32) {
    %c0_i32 = arith.constant 0 : i32
    %c0_i32_0 = arith.constant 0 : i32
    return %arg0, %c0_i32 : i32, i32
  }
  func.func @transform_2(%arg0: i32, %arg1: i32, %arg2: i32) -> (i32, i32) {
    %c0_i32 = arith.constant 0 : i32
    %c0_i32_0 = arith.constant 0 : i32
    return %arg0, %c0_i32 : i32, i32
  }
  func.func @transform_3(%arg0: i32, %arg1: i32, %arg2: i32) -> (i32, i32) {
    %c0_i32 = arith.constant 0 : i32
    return %arg2, %arg1 : i32, i32
  }
  func.func @transform_4(%arg0: i32, %arg1: i32, %arg2: i32) -> (i32, i32) {
    %c0_i32 = arith.constant 0 : i32
    %c0_i32_0 = arith.constant 0 : i32
    return %c0_i32, %arg1 : i32, i32
  }
  func.func @transform_5(%arg0: i32, %arg1: i32, %arg2: i32) -> (i32, i32) {
    %c0_i32 = arith.constant 0 : i32
    %c0_i32_0 = arith.constant 0 : i32
    return %c0_i32, %arg1 : i32, i32
  }
  func.func @transform_6(%arg0: i32, %arg1: i32, %arg2: i32) -> (i32, i32) {
    %c0_i32 = arith.constant 0 : i32
    return %arg0, %arg1 : i32, i32
  }
}

</mosaic_0001>

<llo_original>
// kernel: barlow_twins_loss.2
$region0: #{barlow_twins_loss.2}
  #allocation0 [shape = 'u32[]', space=smem, size = 0x4, offset = 0x4, fixed_abs, tag = 'smem constant byte address 0x4 - core index']
  #allocation1 [shape = 'u32[144,128]{1,0:T(1,128)}', space=vmem, size = 0x12000, scoped, tag = 'internal scratch']
  %s0 = inlined_call_operand.vmem [shape: f32[128,32], index: 0, kind: input, shape index: {}]
  %s1 = inlined_call_operand.vmem [shape: f32[128,32], index: 1, kind: input, shape index: {}]
  %s2 = inlined_call_operand.vmem [shape: f32[1,32], index: 2, kind: output, shape index: {0}]
  %s3 = inlined_call_operand.vmem [shape: f32[1,32], index: 3, kind: output, shape index: {1}]
  %s4 = inlined_call_operand.vmem [shape: f32[1,32], index: 4, kind: output, shape index: {2}]
  %s5 = inlined_call_operand.vmem [shape: f32[1,32], index: 5, kind: output, shape index: {3}]
  %6 = xla_tuple %s2, %s3, %s4, %s5
  %s7 = sld [smem:[#allocation0]]
  $region50: #{barlow_twins_loss.2} parent=0
    _
  %s9 = ssub.s32 1, %s7
  %s10 = scalar_select 0, %s9, %s7
  // Predicated region
  $region2: #{barlow_twins_loss.2} parent=0 // pred_check
    _
  $region3: #{barlow_twins_loss.2} parent=0 // pred_check_branch
    %12 = sbr.rel (0) target = $region5
  $region4: #{barlow_twins_loss.2} parent=0 // pred_region
    _
  $region5: #{barlow_twins_loss.2} parent=0 // pred_fallthru
    _
  // Predicated region
  $region6: #{barlow_twins_loss.2} parent=0 // pred_check
    _
  $region7: #{barlow_twins_loss.2} parent=0 // pred_check_branch
    %14 = sbr.rel (0) target = $region9
  $region8: #{barlow_twins_loss.2} parent=0 // pred_region
    _
  $region9: #{barlow_twins_loss.2} parent=0 // pred_fallthru
    _
  %p15 = scmp.eq.s32.totalorder 0, 0
  // Predicated region
  $region10: #{barlow_twins_loss.2} parent=0 // pred_check
    %p16 = pneg %p15
  $region11: #{barlow_twins_loss.2} parent=0 // pred_check_branch
    %18 = sbr.rel (%p16) target = $region13
  $region12: #{barlow_twins_loss.2} parent=0 // pred_region
    %vm19 = vcmask 253952
    %20 = vst.msk [vmem:[%s2] sm:$0x1] %vm19, 0.0
    %21 = vst.msk [vmem:[%s3] sm:$0x1] %vm19, 0.0
    %22 = vst.msk [vmem:[%s4] sm:$0x1] %vm19, 0.0
    %23 = vst.msk [vmem:[%s5] sm:$0x1] %vm19, 0.0
  $region13: #{barlow_twins_loss.2} parent=0 // pred_fallthru
    _
  %v24 = vld [vmem:[%s0] sm:$0xff]
  %v25 = vld [vmem:[%s0 + $0x8] sm:$0xff]
  %v26 = vld [vmem:[%s0 + $0x10] sm:$0xff]
  %v27 = vld [vmem:[%s0 + $0x18] sm:$0xff]
  %v28 = vld [vmem:[%s0 + $0x20] sm:$0xff]
  %v29 = vld [vmem:[%s0 + $0x28] sm:$0xff]
  %v30 = vld [vmem:[%s0 + $0x30] sm:$0xff]
  %v31 = vld [vmem:[%s0 + $0x38] sm:$0xff]
  %v32 = vld [vmem:[%s0 + $0x40] sm:$0xff]
  %v33 = vld [vmem:[%s0 + $0x48] sm:$0xff]
  %v34 = vld [vmem:[%s0 + $0x50] sm:$0xff]
  %v35 = vld [vmem:[%s0 + $0x58] sm:$0xff]
  %v36 = vld [vmem:[%s0 + $0x60] sm:$0xff]
  %v37 = vld [vmem:[%s0 + $0x68] sm:$0xff]
  %v38 = vld [vmem:[%s0 + $0x70] sm:$0xff]
  %v39 = vld [vmem:[%s0 + $0x78] sm:$0xff]
  %v40 = vld [vmem:[%s1] sm:$0xff]
  %v41 = vld [vmem:[%s1 + $0x8] sm:$0xff]
  %v42 = vld [vmem:[%s1 + $0x10] sm:$0xff]
  %v43 = vld [vmem:[%s1 + $0x18] sm:$0xff]
  %v44 = vld [vmem:[%s1 + $0x20] sm:$0xff]
  %v45 = vld [vmem:[%s1 + $0x28] sm:$0xff]
  %v46 = vld [vmem:[%s1 + $0x30] sm:$0xff]
  %v47 = vld [vmem:[%s1 + $0x38] sm:$0xff]
  %v48 = vld [vmem:[%s1 + $0x40] sm:$0xff]
  %v49 = vld [vmem:[%s1 + $0x48] sm:$0xff]
  %v50 = vld [vmem:[%s1 + $0x50] sm:$0xff]
  %v51 = vld [vmem:[%s1 + $0x58] sm:$0xff]
  %v52 = vld [vmem:[%s1 + $0x60] sm:$0xff]
  %v53 = vld [vmem:[%s1 + $0x68] sm:$0xff]
  %v54 = vld [vmem:[%s1 + $0x70] sm:$0xff]
  %v55 = vld [vmem:[%s1 + $0x78] sm:$0xff]
  %v56 = vld [vmem:[%s2] sm:$0x1]
  %vm57 = vcmask 261120
  %v58 = vsel %vm57, %v24, 0.0
  %v59 = vsel %vm57, %v25, 0.0
  %v60 = vadd.f32 %v58, %v59
  %v61 = vsel %vm57, %v26, 0.0
  %v62 = vadd.f32 %v60, %v61
  %v63 = vsel %vm57, %v27, 0.0
  %v64 = vadd.f32 %v62, %v63
  %v65 = vsel %vm57, %v28, 0.0
  %v66 = vadd.f32 %v64, %v65
  %v67 = vsel %vm57, %v29, 0.0
  %v68 = vadd.f32 %v66, %v67
  %v69 = vsel %vm57, %v30, 0.0
  %v70 = vadd.f32 %v68, %v69
  %v71 = vsel %vm57, %v31, 0.0
  %v72 = vadd.f32 %v70, %v71
  %v73 = vsel %vm57, %v32, 0.0
  %v74 = vadd.f32 %v72, %v73
  %v75 = vsel %vm57, %v33, 0.0
  %v76 = vadd.f32 %v74, %v75
  %v77 = vsel %vm57, %v34, 0.0
  %v78 = vadd.f32 %v76, %v77
  %v79 = vsel %vm57, %v35, 0.0
  %v80 = vadd.f32 %v78, %v79
  %v81 = vsel %vm57, %v36, 0.0
  %v82 = vadd.f32 %v80, %v81
  %v83 = vsel %vm57, %v37, 0.0
  %v84 = vadd.f32 %v82, %v83
  %v85 = vsel %vm57, %v38, 0.0
  %v86 = vadd.f32 %v84, %v85
  %v87 = vsel %vm57, %v39, 0.0
  %v88 = vadd.f32 %v86, %v87
  %v89 = vrot.slane %v88, 4
  %v90 = vadd.f32 %v88, %v89
  %v91 = vrot.slane %v90, 2
  %v92 = vadd.f32 %v90, %v91
  %v93 = vrot.slane %v92, 1
  %v94 = vadd.f32 %v92, %v93
  %v95 = vadd.f32 %v56, %v94
  %vm96 = vcmask 253952
  %97 = vst.msk [vmem:[%s2] sm:$0x1] %vm96, %v95
  %v98 = vld [vmem:[%s3] sm:$0x1]
  %v99 = vmul.f32 %v24, %v24
  %v100 = vmul.f32 %v25, %v25
  %v101 = vmul.f32 %v26, %v26
  %v102 = vmul.f32 %v27, %v27
  %v103 = vmul.f32 %v28, %v28
  %v104 = vmul.f32 %v29, %v29
  %v105 = vmul.f32 %v30, %v30
  %v106 = vmul.f32 %v31, %v31
  %v107 = vmul.f32 %v32, %v32
  %v108 = vmul.f32 %v33, %v33
  %v109 = vmul.f32 %v34, %v34
  %v110 = vmul.f32 %v35, %v35
  %v111 = vmul.f32 %v36, %v36
  %v112 = vmul.f32 %v37, %v37
  %v113 = vmul.f32 %v38, %v38
  %v114 = vmul.f32 %v39, %v39
  %v115 = vsel %vm57, %v99, 0.0
  %v116 = vsel %vm57, %v100, 0.0
  %v117 = vadd.f32 %v115, %v116
  %v118 = vsel %vm57, %v101, 0.0
  %v119 = vadd.f32 %v117, %v118
  %v120 = vsel %vm57, %v102, 0.0
  %v121 = vadd.f32 %v119, %v120
  %v122 = vsel %vm57, %v103, 0.0
  %v123 = vadd.f32 %v121, %v122
  %v124 = vsel %vm57, %v104, 0.0
  %v125 = vadd.f32 %v123, %v124
  %v126 = vsel %vm57, %v105, 0.0
  %v127 = vadd.f32 %v125, %v126
  %v128 = vsel %vm57, %v106, 0.0
  %v129 = vadd.f32 %v127, %v128
  %v130 = vsel %vm57, %v107, 0.0
  %v131 = vadd.f32 %v129, %v130
  %v132 = vsel %vm57, %v108, 0.0
  %v133 = vadd.f32 %v131, %v132
  %v134 = vsel %vm57, %v109, 0.0
  %v135 = vadd.f32 %v133, %v134
  %v136 = vsel %vm57, %v110, 0.0
  %v137 = vadd.f32 %v135, %v136
  %v138 = vsel %vm57, %v111, 0.0
  %v139 = vadd.f32 %v137, %v138
  %v140 = vsel %vm57, %v112, 0.0
  %v141 = vadd.f32 %v139, %v140
  %v142 = vsel %vm57, %v113, 0.0
  %v143 = vadd.f32 %v141, %v142
  %v144 = vsel %vm57, %v114, 0.0
  %v145 = vadd.f32 %v143, %v144
  %v146 = vrot.slane %v145, 4
  %v147 = vadd.f32 %v145, %v146
  %v148 = vrot.slane %v147, 2
  %v149 = vadd.f32 %v147, %v148
  %v150 = vrot.slane %v149, 1
  %v151 = vadd.f32 %v149, %v150
  %v152 = vadd.f32 %v98, %v151
  %153 = vst.msk [vmem:[%s3] sm:$0x1] %vm96, %v152
  %v154 = vld [vmem:[%s4] sm:$0x1]
  %v155 = vsel %vm57, %v40, 0.0
  %v156 = vsel %vm57, %v41, 0.0
  %v157 = vadd.f32 %v155, %v156
  %v158 = vsel %vm57, %v42, 0.0
  %v159 = vadd.f32 %v157, %v158
  %v160 = vsel %vm57, %v43, 0.0
  %v161 = vadd.f32 %v159, %v160
  %v162 = vsel %vm57, %v44, 0.0
  %v163 = vadd.f32 %v161, %v162
  %v164 = vsel %vm57, %v45, 0.0
  %v165 = vadd.f32 %v163, %v164
  %v166 = vsel %vm57, %v46, 0.0
  %v167 = vadd.f32 %v165, %v166
  %v168 = vsel %vm57, %v47, 0.0
  %v169 = vadd.f32 %v167, %v168
  %v170 = vsel %vm57, %v48, 0.0
  %v171 = vadd.f32 %v169, %v170
  %v172 = vsel %vm57, %v49, 0.0
  %v173 = vadd.f32 %v171, %v172
  %v174 = vsel %vm57, %v50, 0.0
  %v175 = vadd.f32 %v173, %v174
  %v176 = vsel %vm57, %v51, 0.0
  %v177 = vadd.f32 %v175, %v176
  %v178 = vsel %vm57, %v52, 0.0
  %v179 = vadd.f32 %v177, %v178
  %v180 = vsel %vm57, %v53, 0.0
  %v181 = vadd.f32 %v179, %v180
  %v182 = vsel %vm57, %v54, 0.0
  %v183 = vadd.f32 %v181, %v182
  %v184 = vsel %vm57, %v55, 0.0
  %v185 = vadd.f32 %v183, %v184
  %v186 = vrot.slane %v185, 4
  %v187 = vadd.f32 %v185, %v186
  %v188 = vrot.slane %v187, 2
  %v189 = vadd.f32 %v187, %v188
  %v190 = vrot.slane %v189, 1
  %v191 = vadd.f32 %v189, %v190
  %v192 = vadd.f32 %v154, %v191
  %193 = vst.msk [vmem:[%s4] sm:$0x1] %vm96, %v192
  %v194 = vld [vmem:[%s5] sm:$0x1]
  %v195 = vmul.f32 %v40, %v40
  %v196 = vmul.f32 %v41, %v41
  %v197 = vmul.f32 %v42, %v42
  %v198 = vmul.f32 %v43, %v43
  %v199 = vmul.f32 %v44, %v44
  %v200 = vmul.f32 %v45, %v45
  %v201 = vmul.f32 %v46, %v46
  %v202 = vmul.f32 %v47, %v47
  %v203 = vmul.f32 %v48, %v48
  %v204 = vmul.f32 %v49, %v49
  %v205 = vmul.f32 %v50, %v50
  %v206 = vmul.f32 %v51, %v51
  %v207 = vmul.f32 %v52, %v52
  %v208 = vmul.f32 %v53, %v53
  %v209 = vmul.f32 %v54, %v54
  %v210 = vmul.f32 %v55, %v55
  %v211 = vsel %vm57, %v195, 0.0
  %v212 = vsel %vm57, %v196, 0.0
  %v213 = vadd.f32 %v211, %v212
  %v214 = vsel %vm57, %v197, 0.0
  %v215 = vadd.f32 %v213, %v214
  %v216 = vsel %vm57, %v198, 0.0
  %v217 = vadd.f32 %v215, %v216
  %v218 = vsel %vm57, %v199, 0.0
  %v219 = vadd.f32 %v217, %v218
  %v220 = vsel %vm57, %v200, 0.0
  %v221 = vadd.f32 %v219, %v220
  %v222 = vsel %vm57, %v201, 0.0
  %v223 = vadd.f32 %v221, %v222
  %v224 = vsel %vm57, %v202, 0.0
  %v225 = vadd.f32 %v223, %v224
  %v226 = vsel %vm57, %v203, 0.0
  %v227 = vadd.f32 %v225, %v226
  %v228 = vsel %vm57, %v204, 0.0
  %v229 = vadd.f32 %v227, %v228
  %v230 = vsel %vm57, %v205, 0.0
  %v231 = vadd.f32 %v229, %v230
  %v232 = vsel %vm57, %v206, 0.0
  %v233 = vadd.f32 %v231, %v232
  %v234 = vsel %vm57, %v207, 0.0
  %v235 = vadd.f32 %v233, %v234
  %v236 = vsel %vm57, %v208, 0.0
  %v237 = vadd.f32 %v235, %v236
  %v238 = vsel %vm57, %v209, 0.0
  %v239 = vadd.f32 %v237, %v238
  %v240 = vsel %vm57, %v210, 0.0
  %v241 = vadd.f32 %v239, %v240
  %v242 = vrot.slane %v241, 4
  %v243 = vadd.f32 %v241, %v242
  %v244 = vrot.slane %v243, 2
  %v245 = vadd.f32 %v243, %v244
  %v246 = vrot.slane %v245, 1
  %v247 = vadd.f32 %v245, %v246
  %v248 = vadd.f32 %v194, %v247
  %249 = vst.msk [vmem:[%s5] sm:$0x1] %vm96, %v248
  // Predicated region
  $region14: #{barlow_twins_loss.2} parent=0 // pred_check
    %p250 = pneg %p15
  $region15: #{barlow_twins_loss.2} parent=0 // pred_check_branch
    %252 = sbr.rel (%p250) target = $region17
  $region16: #{barlow_twins_loss.2} parent=0 // pred_region
    %v253 = vld [vmem:[%s2] sm:$0x1]
    %v254 = vmul.f32 %v253, 0.125
    %v255 = vld [vmem:[%s3] sm:$0x1]
    %v256 = vmul.f32 %v255, 0.125
    %v257 = vmul.f32 %v254, %v254
    %v258 = vsub.f32 %v256, %v257
    %v259 = vmax.f32 %v258, 0.0
    %260 = vst.msk [vmem:[%s2] sm:$0x1] %vm96, %v254
    %v261 = vadd.f32 %v259, 1e-05
    %v262 = vrsqrt.pop %v261
    %263 = vst.msk [vmem:[%s3] sm:$0x1] %vm96, %v262
    %v264 = vld [vmem:[%s4] sm:$0x1]
    %v265 = vmul.f32 %v264, 0.125
    %v266 = vld [vmem:[%s5] sm:$0x1]
    %v267 = vmul.f32 %v266, 0.125
    %v268 = vmul.f32 %v265, %v265
    %v269 = vsub.f32 %v267, %v268
    %v270 = vmax.f32 %v269, 0.0
    %271 = vst.msk [vmem:[%s4] sm:$0x1] %vm96, %v265
    %v272 = vadd.f32 %v270, 1e-05
    %v273 = vrsqrt.pop %v272
    %274 = vst.msk [vmem:[%s5] sm:$0x1] %vm96, %v273
  $region17: #{barlow_twins_loss.2} parent=0 // pred_fallthru
    _
  // Predicated region
  $region18: #{barlow_twins_loss.2} parent=0 // pred_check
    _
  $region19: #{barlow_twins_loss.2} parent=0 // pred_check_branch
    %276 = sbr.rel (0) target = $region21
  $region20: #{barlow_twins_loss.2} parent=0 // pred_region
    _
  $region21: #{barlow_twins_loss.2} parent=0 // pred_fallthru
    _
  // Predicated region
  $region22: #{barlow_twins_loss.2} parent=0 // pred_check
    _
  $region23: #{barlow_twins_loss.2} parent=0 // pred_check_branch
    %278 = sbr.rel (0) target = $region25
  $region24: #{barlow_twins_loss.2} parent=0 // pred_region
    _
  $region25: #{barlow_twins_loss.2} parent=0 // pred_fallthru
    _
  // Predicated region
  $region26: #{barlow_twins_loss.2} parent=0 // pred_check
    _
  $region27: #{barlow_twins_loss.2} parent=0 // pred_check_branch
    %280 = sbr.rel (0) target = $region29
  $region28: #{barlow_twins_loss.2} parent=0 // pred_region
    _
  $region29: #{barlow_twins_loss.2} parent=0 // pred_fallthru
    _
  // Predicated region
  $region30: #{barlow_twins_loss.2} parent=0 // pred_check
    _
  $region31: #{barlow_twins_loss.2} parent=0 // pred_check_branch
    %282 = sbr.rel (0) target = $region33
  $region32: #{barlow_twins_loss.2} parent=0 // pred_region
    _
  $region33: #{barlow_twins_loss.2} parent=0 // pred_fallthru
    _
  // Predicated region
  $region34: #{barlow_twins_loss.2} parent=0 // pred_check
    _
  $region35: #{barlow_twins_loss.2} parent=0 // pred_check_branch
    %284 = sbr.rel (0) target = $region37
  $region36: #{barlow_twins_loss.2} parent=0 // pred_region
    _
  $region37: #{barlow_twins_loss.2} parent=0 // pred_fallthru
    _
  // Predicated region
  $region38: #{barlow_twins_loss.2} parent=0 // pred_check
    _
  $region39: #{barlow_twins_loss.2} parent=0 // pred_check_branch
    %286 = sbr.rel (0) target = $region41
  $region40: #{barlow_twins_loss.2} parent=0 // pred_region
    _
  $region41: #{barlow_twins_loss.2} parent=0 // pred_fallthru
    _
  // Predicated region
  $region42: #{barlow_twins_loss.2} parent=0 // pred_check
    _
  $region43: #{barlow_twins_loss.2} parent=0 // pred_check_branch
    %288 = sbr.rel (0) target = $region45
  $region44: #{barlow_twins_loss.2} parent=0 // pred_region
    _
  $region45: #{barlow_twins_loss.2} parent=0 // pred_fallthru
    _
  // Predicated region
  $region46: #{barlow_twins_loss.2} parent=0 // pred_check
    _
  $region47: #{barlow_twins_loss.2} parent=0 // pred_check_branch
    %290 = sbr.rel (0) target = $region49
  $region48: #{barlow_twins_loss.2} parent=0 // pred_region
    _
  $region49: #{barlow_twins_loss.2} parent=0 // pred_fallthru
    _

// kernel: barlow_twins_loss.3
$region0: #{barlow_twins_loss.3}
  #allocation0 [shape = 'u32[]', space=smem, size = 0x4, offset = 0x4, fixed_abs, tag = 'smem constant byte address 0x4 - core index']
  #allocation1 [shape = 'u32[144,128]{1,0:T(1,128)}', space=vmem, size = 0x12000, scoped, tag = 'internal scratch']
  #allocation2 [shape = 'f32[32,32]{1,0:T(8,128)}', space=vmem, size = 0x4000, scoped, tag = 'scratch operand']
  %s0 = inlined_call_operand.vmem [shape: f32[128,32], index: 0, kind: input, shape index: {}]
  %s1 = inlined_call_operand.vmem [shape: f32[32,1], index: 1, kind: input, shape index: {}]
  %s2 = inlined_call_operand.vmem [shape: f32[32,1], index: 2, kind: input, shape index: {}]
  %s3 = inlined_call_operand.vmem [shape: f32[128,32], index: 3, kind: input, shape index: {}]
  %s4 = inlined_call_operand.vmem [shape: f32[1,32], index: 4, kind: input, shape index: {}]
  %s5 = inlined_call_operand.vmem [shape: f32[1,32], index: 5, kind: input, shape index: {}]
  %s6 = inlined_call_operand.hbm [shape: f32[1,1], index: 6, kind: output, shape index: {}]
  %s7 = sld [smem:[#allocation0]]
  $region50: #{barlow_twins_loss.3} parent=0
    _
  %s9 = ssub.s32 1, %s7
  %s10 = scalar_select 0, %s9, %s7
  $region1: #{barlow_twins_loss.3} parent=0
    #allocation3 [shape = 'u8[512]{0}', space=smem, size = 0x200, scoped, tag = 'output window, operand 0, single buffered']
    #allocation4 [shape = 's32[1]{0}', space=sflag, size = 0x4, scoped, tag = 'scoped memory for barlow_twins_loss.3']
    %11 = vsyncpa [#allocation4], 0
    // Predicated region
    $region2: #{barlow_twins_loss.3} parent=1 // pred_check
      _
    $region3: #{barlow_twins_loss.3} parent=1 // pred_check_branch
      %13 = sbr.rel (0) target = $region5
    $region4: #{barlow_twins_loss.3} parent=1 // pred_region
      _
    $region5: #{barlow_twins_loss.3} parent=1 // pred_fallthru
      _
    // Predicated region
    $region6: #{barlow_twins_loss.3} parent=1 // pred_check
      _
    $region7: #{barlow_twins_loss.3} parent=1 // pred_check_branch
      %15 = sbr.rel (0) target = $region9
    $region8: #{barlow_twins_loss.3} parent=1 // pred_region
      _
    $region9: #{barlow_twins_loss.3} parent=1 // pred_fallthru
      _
    // Predicated region
    $region10: #{barlow_twins_loss.3} parent=1 // pred_check
      _
    $region11: #{barlow_twins_loss.3} parent=1 // pred_check_branch
      %17 = sbr.rel (0) target = $region13
    $region12: #{barlow_twins_loss.3} parent=1 // pred_region
      _
    $region13: #{barlow_twins_loss.3} parent=1 // pred_fallthru
      _
    // Predicated region
    $region14: #{barlow_twins_loss.3} parent=1 // pred_check
      _
    $region15: #{barlow_twins_loss.3} parent=1 // pred_check_branch
      %19 = sbr.rel (0) target = $region17
    $region16: #{barlow_twins_loss.3} parent=1 // pred_region
      _
    $region17: #{barlow_twins_loss.3} parent=1 // pred_fallthru
      _
    // Predicated region
    $region18: #{barlow_twins_loss.3} parent=1 // pred_check
      _
    $region19: #{barlow_twins_loss.3} parent=1 // pred_check_branch
      %21 = sbr.rel (0) target = $region21
    $region20: #{barlow_twins_loss.3} parent=1 // pred_region
      _
    $region21: #{barlow_twins_loss.3} parent=1 // pred_fallthru
      _
    // Predicated region
    $region22: #{barlow_twins_loss.3} parent=1 // pred_check
      _
    $region23: #{barlow_twins_loss.3} parent=1 // pred_check_branch
      %23 = sbr.rel (0) target = $region25
    $region24: #{barlow_twins_loss.3} parent=1 // pred_region
      _
    $region25: #{barlow_twins_loss.3} parent=1 // pred_fallthru
      _
    %p25 = scmp.eq.s32.totalorder 0, 0
    // Predicated region
    $region26: #{barlow_twins_loss.3} parent=1 // pred_check
      %p26 = pneg %p25
    $region27: #{barlow_twins_loss.3} parent=1 // pred_check_branch
      %28 = sbr.rel (%p26) target = $region29
    $region28: #{barlow_twins_loss.3} parent=1 // pred_region
      %vm29 = vcmask 261120
      %30 = vst.msk [vmem:[#allocation2] sm:$0xff] %vm29, 0.0
      %31 = vst.msk [vmem:[#allocation2 + $0x8] sm:$0xff] %vm29, 0.0
      %32 = vst.msk [vmem:[#allocation2 + $0x10] sm:$0xff] %vm29, 0.0
      %33 = vst.msk [vmem:[#allocation2 + $0x18] sm:$0xff] %vm29, 0.0
    $region29: #{barlow_twins_loss.3} parent=1 // pred_fallthru
      _
    %v34 = vld [vmem:[%s0] sm:$0xff]
    %v35 = vld [vmem:[%s0 + $0x8] sm:$0xff]
    %v36 = vld [vmem:[%s0 + $0x10] sm:$0xff]
    %v37 = vld [vmem:[%s0 + $0x18] sm:$0xff]
    %v38 = vld [vmem:[%s0 + $0x20] sm:$0xff]
    %v39 = vld [vmem:[%s0 + $0x28] sm:$0xff]
    %v40 = vld [vmem:[%s0 + $0x30] sm:$0xff]
    %v41 = vld [vmem:[%s0 + $0x38] sm:$0xff]
    %v42 = vld [vmem:[%s0 + $0x40] sm:$0xff]
    %v43 = vld [vmem:[%s0 + $0x48] sm:$0xff]
    %v44 = vld [vmem:[%s0 + $0x50] sm:$0xff]
    %v45 = vld [vmem:[%s0 + $0x58] sm:$0xff]
    %v46 = vld [vmem:[%s0 + $0x60] sm:$0xff]
    %v47 = vld [vmem:[%s0 + $0x68] sm:$0xff]
    %v48 = vld [vmem:[%s0 + $0x70] sm:$0xff]
    %v49 = vld [vmem:[%s0 + $0x78] sm:$0xff]
    %v50 = vpack.c.bf16 %v35, %v34
    %v51 = vpack.c.bf16 %v37, %v36
    %v52 = vpack.c.bf16 %v39, %v38
    %v53 = vpack.c.bf16 %v41, %v40
    %v54 = vpack.c.bf16 %v43, %v42
    %v55 = vpack.c.bf16 %v45, %v44
    %v56 = vpack.c.bf16 %v47, %v46
    %v57 = vpack.c.bf16 %v49, %v48
    %v58 = vld [vmem:[%s3] sm:$0xff]
    %v59 = vld [vmem:[%s3 + $0x8] sm:$0xff]
    %v60 = vld [vmem:[%s3 + $0x10] sm:$0xff]
    %v61 = vld [vmem:[%s3 + $0x18] sm:$0xff]
    %v62 = vld [vmem:[%s3 + $0x20] sm:$0xff]
    %v63 = vld [vmem:[%s3 + $0x28] sm:$0xff]
    %v64 = vld [vmem:[%s3 + $0x30] sm:$0xff]
    %v65 = vld [vmem:[%s3 + $0x38] sm:$0xff]
    %v66 = vld [vmem:[%s3 + $0x40] sm:$0xff]
    %v67 = vld [vmem:[%s3 + $0x48] sm:$0xff]
    %v68 = vld [vmem:[%s3 + $0x50] sm:$0xff]
    %v69 = vld [vmem:[%s3 + $0x58] sm:$0xff]
    %v70 = vld [vmem:[%s3 + $0x60] sm:$0xff]
    %v71 = vld [vmem:[%s3 + $0x68] sm:$0xff]
    %v72 = vld [vmem:[%s3 + $0x70] sm:$0xff]
    %v73 = vld [vmem:[%s3 + $0x78] sm:$0xff]
    %v74 = vpack.c.bf16 %v59, %v58
    %v75 = vpack.c.bf16 %v61, %v60
    %v76 = vpack.c.bf16 %v63, %v62
    %v77 = vpack.c.bf16 %v65, %v64
    %v78 = vpack.c.bf16 %v67, %v66
    %v79 = vpack.c.bf16 %v69, %v68
    %v80 = vpack.c.bf16 %v71, %v70
    %v81 = vpack.c.bf16 %v73, %v72
    %v82 = vld [vmem:[#allocation2] sm:$0xff]
    %v83 = vld [vmem:[#allocation2 + $0x8] sm:$0xff]
    %v84 = vld [vmem:[#allocation2 + $0x10] sm:$0xff]
    %v85 = vld [vmem:[#allocation2 + $0x18] sm:$0xff]
    %86 = vxpose.xlu0.c.b16.start [1/8] %v50, 128
    %87 = vxpose.xlu0.c.b16.cont [2/8] %v51, 128
    %88 = vxpose.xlu0.c.b16.cont [3/8] %v52, 128
    %89 = vxpose.xlu0.c.b16.cont [4/8] %v53, 128
    %90 = vxpose.xlu0.c.b16.cont [5/8] %v54, 128
    %91 = vxpose.xlu0.c.b16.cont [6/8] %v55, 128
    %92 = vxpose.xlu0.c.b16.cont [7/8] %v56, 128
    %93 = vxpose.xlu0.c.b16.end [8/8] %v57, 128
    %v94 = vpop.trf.xlu0
    %v95 = vpop.trf.xlu0
    %v96 = vpop.trf.xlu0
    %v97 = vpop.trf.xlu0
    %v98 = vpop.trf.xlu0
    %v99 = vpop.trf.xlu0
    %v100 = vpop.trf.xlu0
    %v101 = vpop.trf.xlu0
    %102 = vmatprep.subr.bf16.mxu0 0
    %103 = vmatpush1.bf16.msra.mxu0 %v81
    %104 = vmatprep.subr.bf16.mxu0 0
    %105 = vmatpush1.bf16.msra.mxu0 %v80
    %106 = vmatprep.subr.bf16.mxu0 0
    %107 = vmatpush1.bf16.msra.mxu0 %v79
    %108 = vmatprep.subr.bf16.mxu0 0
    %109 = vmatpush1.bf16.msra.mxu0 %v78
    %110 = vmatprep.subr.bf16.mxu0 0
    %111 = vmatpush1.bf16.msra.mxu0 %v77
    %112 = vmatprep.subr.bf16.mxu0 0
    %113 = vmatpush1.bf16.msra.mxu0 %v76
    %114 = vmatprep.subr.bf16.mxu0 0
    %115 = vmatpush1.bf16.msra.mxu0 %v75
    %116 = vmatprep.subr.bf16.mxu0 0
    %117 = vmatpush1.bf16.msra.mxu0 %v74
    %118 = vmatprep.subr.bf16.mxu0 0
    %119 = vmatpush2.bf16.msra.mxu0 0
    %120 = vmatprep.subr.bf16.mxu0 0
    %121 = vmatpush2.bf16.msra.mxu0 0
    %122 = vmatprep.subr.bf16.mxu0 0
    %123 = vmatpush2.bf16.msra.mxu0 0
    %124 = vmatprep.subr.bf16.mxu0 0
    %125 = vmatpush2.bf16.msra.mxu0 0
    %126 = vmatprep.subr.bf16.mxu0 0
    %127 = vmatpush2.bf16.msra.mxu0 0
    %128 = vmatprep.subr.bf16.mxu0 0
    %129 = vmatpush2.bf16.msra.mxu0 0
    %130 = vmatprep.subr.bf16.mxu0 0
    %131 = vmatpush2.bf16.msra.mxu0 0
    %132 = vmatprep.subr.bf16.mxu0 0
    %133 = vmatpush2.bf16.msra.mxu0 0
    %134 = vmatprep.mubr.bf16.mxu0 0
    %135 = vmatmul.mubr.bf16.gmra.mxu0 %v94
    %v136 = vpop.f32.mrf.mxu0
    %v137 = vadd.f32 0.0, %v136
    %v138 = vpop.f32.mrf.mxu0
    %v139 = vpop.f32.mrf.mxu0
    %v140 = vadd.f32 0.0, %v139
    %v141 = vpop.f32.mrf.mxu0
    %142 = vmatprep.mubr.bf16.mxu0 0
    %143 = vmatmul.mubr.bf16.gmra.mxu0 %v95
    %v144 = vpop.f32.mrf.mxu0
    %v145 = vadd.f32 0.0, %v144
    %v146 = vpop.f32.mrf.mxu0
    %v147 = vpop.f32.mrf.mxu0
    %v148 = vadd.f32 0.0, %v147
    %v149 = vpop.f32.mrf.mxu0
    %150 = vdwg.mxu0
    %v151 = vadd.f32 %v82, %v137
    %v152 = vadd.f32 %v83, %v140
    %v153 = vadd.f32 %v84, %v145
    %v154 = vadd.f32 %v85, %v148
    %vm155 = vcmask 261120
    %156 = vst.msk [vmem:[#allocation2] sm:$0xff] %vm155, %v151
    %157 = vst.msk [vmem:[#allocation2 + $0x8] sm:$0xff] %vm155, %v152
    %158 = vst.msk [vmem:[#allocation2 + $0x10] sm:$0xff] %vm155, %v153
    %159 = vst.msk [vmem:[#allocation2 + $0x18] sm:$0xff] %vm155, %v154
    // Predicated region
    $region30: #{barlow_twins_loss.3} parent=1 // pred_check
      %p160 = pneg %p25
    $region31: #{barlow_twins_loss.3} parent=1 // pred_check_branch
      %162 = sbr.rel (%p160) target = $region33
    $region32: #{barlow_twins_loss.3} parent=1 // pred_region
      %v163 = vld [vmem:[#allocation2] sm:$0xff]
      %v164 = vld [vmem:[#allocation2 + $0x8] sm:$0xff]
      %v165 = vld [vmem:[#allocation2 + $0x10] sm:$0xff]
      %v166 = vld [vmem:[#allocation2 + $0x18] sm:$0xff]
      %v167 = vmul.f32 %v163, 0.125
      %v168 = vmul.f32 %v164, 0.125
      %v169 = vmul.f32 %v165, 0.125
      %v170 = vmul.f32 %v166, 0.125
      %v171 = vld [vmem:[%s2] sm:$0xff]
      %v172 = vld [vmem:[%s2 + $0x8] sm:$0xff]
      %v173 = vld [vmem:[%s2 + $0x10] sm:$0xff]
      %v174 = vld [vmem:[%s2 + $0x18] sm:$0xff]
      %v175 = vld [vmem:[%s5] sm:$0x1]
      %177 = vset.pattern.permute.xlu0 0
      %178 = vperm.xlu0 %177, %v171
      %v179 = vpop.permute.xlu0 %178
      %182 = vset.pattern.permute.xlu0 0
      %183 = vperm.xlu0 %182, %v172
      %v184 = vpop.permute.xlu0 %183
      %187 = vset.pattern.permute.xlu0 0
      %188 = vperm.xlu0 %187, %v173
      %v189 = vpop.permute.xlu0 %188
      %192 = vset.pattern.permute.xlu0 0
      %193 = vperm.xlu0 %192, %v174
      %v194 = vpop.permute.xlu0 %193
      %v197 = vlaneseq
      %v198 = vshrl.u32 %v197, 7
      %v199 = vsub.s32 0, %v198
      %v200 = vrot.slane %v175, %v199
      %v202 = vmul.f32 %v179, %v200
      %v203 = vmul.f32 %v184, %v200
      %v204 = vmul.f32 %v189, %v200
      %v205 = vmul.f32 %v194, %v200
      %v206 = vld [vmem:[%s1] sm:$0xff]
      %v207 = vld [vmem:[%s1 + $0x8] sm:$0xff]
      %v208 = vld [vmem:[%s1 + $0x10] sm:$0xff]
      %v209 = vld [vmem:[%s1 + $0x18] sm:$0xff]
      %v210 = vld [vmem:[%s4] sm:$0x1]
      %212 = vset.pattern.permute.xlu0 0
      %213 = vperm.xlu0 %212, %v206
      %v214 = vpop.permute.xlu0 %213
      %217 = vset.pattern.permute.xlu0 0
      %218 = vperm.xlu0 %217, %v207
      %v219 = vpop.permute.xlu0 %218
      %222 = vset.pattern.permute.xlu0 0
      %223 = vperm.xlu0 %222, %v208
      %v224 = vpop.permute.xlu0 %223
      %227 = vset.pattern.permute.xlu0 0
      %228 = vperm.xlu0 %227, %v209
      %v229 = vpop.permute.xlu0 %228
      %v232 = vlaneseq
      %v233 = vshrl.u32 %v232, 7
      %v234 = vsub.s32 0, %v233
      %v235 = vrot.slane %v210, %v234
      %v237 = vmul.f32 %v214, %v235
      %v238 = vmul.f32 %v219, %v235
      %v239 = vmul.f32 %v224, %v235
      %v240 = vmul.f32 %v229, %v235
      %v241 = vsub.f32 %v167, %v237
      %v242 = vsub.f32 %v168, %v238
      %v243 = vsub.f32 %v169, %v239
      %v244 = vsub.f32 %v170, %v240
      %v245 = vmul.f32 %v202, %v241
      %v246 = vmul.f32 %v203, %v242
      %v247 = vmul.f32 %v204, %v243
      %v248 = vmul.f32 %v205, %v244
      %p249 = scmp.eq.s32.totalorder 0, 0
      // Predicated region
      $region34: #{barlow_twins_loss.3} parent=32 // pred_check
        %p250 = pneg %p249
      $region35: #{barlow_twins_loss.3} parent=32 // pred_check_branch
        %252 = sbr.rel (%p250) target = $region37
      $region36: #{barlow_twins_loss.3} parent=32 // pred_region
        %v253 = vlaneseq
        %v254 = vshrl.u32 %v253, 7
        %v255 = vadd.s32 %v254, 8
        %v256 = vadd.s32 %v254, 16
        %v257 = vadd.s32 %v254, 24
        %v258 = vlaneseq
        %v259 = vand.u32 %v258, 127
        %v260 = vsub.f32 %v245, 1.0
        %v261 = vsub.f32 %v246, 1.0
        %v262 = vsub.f32 %v247, 1.0
        %v263 = vsub.f32 %v248, 1.0
        %v264 = vmul.f32 %v260, %v260
        %v265 = vmul.f32 %v261, %v261
        %v266 = vmul.f32 %v262, %v262
        %v267 = vmul.f32 %v263, %v263
        %v268 = vmul.f32 %v245, 0.005
        %v269 = vmul.f32 %v246, 0.005
        %v270 = vmul.f32 %v247, 0.005
        %v271 = vmul.f32 %v248, 0.005
        %v272 = vmul.f32 %v268, %v245
        %v273 = vmul.f32 %v269, %v246
        %v274 = vmul.f32 %v270, %v247
        %v275 = vmul.f32 %v271, %v248
        %vm276 = vcmp.eq.s32.totalorder %v254, %v259
        %vm277 = vcmp.eq.s32.totalorder %v255, %v259
        %vm278 = vcmp.eq.s32.totalorder %v256, %v259
        %vm279 = vcmp.eq.s32.totalorder %v257, %v259
        %v280 = vsel %vm276, %v264, %v272
        %v281 = vsel %vm277, %v265, %v273
        %v282 = vsel %vm278, %v266, %v274
        %v283 = vsel %vm279, %v267, %v275
        %v284 = vsel %vm155, %v280, 0.0
        %v285 = vsel %vm155, %v281, 0.0
        %v286 = vadd.f32 %v284, %v285
        %v287 = vsel %vm155, %v282, 0.0
        %v288 = vadd.f32 %v286, %v287
        %v289 = vsel %vm155, %v283, 0.0
        %v290 = vadd.f32 %v288, %v289
        %291 = vadd.xlane.f32.xlu0 %v290
        %v292 = vpop.xlane.xlu0 %291
        %v293 = vrot.slane %v292, 4
        %v294 = vadd.f32 %v292, %v293
        %v295 = vrot.slane %v294, 2
        %v296 = vadd.f32 %v294, %v295
        %v297 = vrot.slane %v296, 1
        %v298 = vadd.f32 %v296, %v297
        %s299 = vtos %v298
        %s300 = scalar_lea.smem [#allocation3], 0
        %301 = sst [smem:[%s300]] %s299
      $region37: #{barlow_twins_loss.3} parent=32 // pred_fallthru
        _
      %p302 = scmp.ne.s32.totalorder 0, 0
      // Predicated region
      $region38: #{barlow_twins_loss.3} parent=32 // pred_check
        %p303 = pneg %p302
      $region39: #{barlow_twins_loss.3} parent=32 // pred_check_branch
        %305 = sbr.rel (%p303) target = $region41
      $region40: #{barlow_twins_loss.3} parent=32 // pred_region
        %v306 = vmul.f32 %v245, %v245
        %v307 = vmul.f32 %v246, %v246
        %v308 = vmul.f32 %v247, %v247
        %v309 = vmul.f32 %v248, %v248
        %v310 = vsel %vm155, %v306, 0.0
        %v311 = vsel %vm155, %v307, 0.0
        %v312 = vadd.f32 %v310, %v311
        %v313 = vsel %vm155, %v308, 0.0
        %v314 = vadd.f32 %v312, %v313
        %v315 = vsel %vm155, %v309, 0.0
        %v316 = vadd.f32 %v314, %v315
        %317 = vadd.xlane.f32.xlu0 %v316
        %v318 = vpop.xlane.xlu0 %317
        %v319 = vrot.slane %v318, 4
        %v320 = vadd.f32 %v318, %v319
        %v321 = vrot.slane %v320, 2
        %v322 = vadd.f32 %v320, %v321
        %v323 = vrot.slane %v322, 1
        %v324 = vadd.f32 %v322, %v323
        %s325 = vtos %v324
        %s326 = smul.f32 %s325, 0.005
        %s327 = scalar_lea.smem [#allocation3], 0
        %328 = sst [smem:[%s327]] %s326
      $region41: #{barlow_twins_loss.3} parent=32 // pred_fallthru
        _
    $region33: #{barlow_twins_loss.3} parent=1 // pred_fallthru
      _
    // Predicated region
    $region42: #{barlow_twins_loss.3} parent=1 // pred_check
      _
    $region43: #{barlow_twins_loss.3} parent=1 // pred_check_branch
      %330 = sbr.rel (0) target = $region45
    $region44: #{barlow_twins_loss.3} parent=1 // pred_region
      %s332 = ssub.s32 16, 16
      %333 = vsyncadd [#allocation4], %s332
      %336 = dma.smem_to_hbm [#allocation3], 16, %s6, [#allocation4]
    $region45: #{barlow_twins_loss.3} parent=1 // pred_fallthru
      _
    // Predicated region
    $region46: #{barlow_twins_loss.3} parent=1 // pred_check
      _
    $region47: #{barlow_twins_loss.3} parent=1 // pred_check_branch
      %338 = sbr.rel (0) target = $region49
    $region48: #{barlow_twins_loss.3} parent=1 // pred_region
      %339 = dma.done [#allocation4], 16
    $region49: #{barlow_twins_loss.3} parent=1 // pred_fallthru
      _
    %340 = sfence
    %341 = vsyncpa [#allocation4], 1

</llo_original>
